<compile_context>
chip_gen: v6e
topology: v6e:2x2x1
jax: 0.10.0
libtpu: 0.0.40
codegen_flags: <defaults>
</compile_context>

<pallas_src>
import jax
import jax.numpy as jnp
from jax.experimental import pallas as pl
from jax.experimental.pallas import tpu as pltpu


# ----------------------------- kernels --------------------------------------


def _dense_kernel_single_k(x_ref, w_ref, b_ref, o_ref):
    # K axis fully resident: one MXU pass per output tile, bias added once.
    acc = jnp.dot(x_ref[...], w_ref[...], preferred_element_type=jnp.float32)
    o_ref[...] = (acc + b_ref[...].astype(jnp.float32)).astype(o_ref.dtype)


def _dense_kernel_multi_k_f32(x_ref, w_ref, b_ref, o_ref):
    # float32 output: accumulate directly into the resident output tile
    # (no extra f32 scratch and no finalize copy).
    k = pl.program_id(2)

    @pl.when(k == 0)
    def _init():
        o_ref[...] = jnp.zeros_like(o_ref)

    o_ref[...] += jnp.dot(x_ref[...], w_ref[...],
                          preferred_element_type=jnp.float32)

    @pl.when(k == pl.num_programs(2) - 1)
    def _finalize():
        o_ref[...] += b_ref[...].astype(jnp.float32)


def _dense_kernel_multi_k_acc(x_ref, w_ref, b_ref, o_ref, acc_ref):
    # Low-precision output: keep an f32 accumulator scratch across the K axis.
    k = pl.program_id(2)

    @pl.when(k == 0)
    def _init():
        acc_ref[...] = jnp.zeros_like(acc_ref)

    acc_ref[...] += jnp.dot(x_ref[...], w_ref[...],
                            preferred_element_type=jnp.float32)

    @pl.when(k == pl.num_programs(2) - 1)
    def _finalize():
        o_ref[...] = (acc_ref[...] + b_ref[...].astype(jnp.float32)).astype(o_ref.dtype)


# --------------------------- helpers / sizing -------------------------------


def _round_up(n, m):
    return ((n + m - 1) // m) * m


def _vmem_capacity_bytes():
    cap = 64 * 1024 * 1024  # conservative fallback = v7x per-TensorCore VMEM
    try:
        info = pltpu.get_tpu_info()
        cap = int(getattr(info, "vmem_capacity_bytes", cap)) or cap
    except Exception:
        pass
    return cap


def _pick_tile(dim, max_tile, align, max_waste_frac=0.125):
    """Largest `align`-multiple tile <= max_tile whose round-up padding waste on
    `dim` stays under max_waste_frac. `dim` is already a multiple of `align`, so
    the search always terminates (t = align gives zero waste)."""
    hi = max(align, (min(max_tile, dim) // align) * align)
    for t in range(hi, align - 1, -align):
        if _round_up(dim, t) - dim <= max_waste_frac * dim:
            return t
    return align


def _footprint_bytes(tm, tn, tk, in_itemsize, with_acc):
    out_itemsize = 4
    buf = 2 * (tm * tk + tk * tn + tn) * in_itemsize  # double-buffered x, w, bias
    buf += 2 * tm * tn * out_itemsize                 # double-buffered output tile
    if with_acc:
        buf += tm * tn * 4                            # f32 accumulator scratch
    return buf


# ------------------------------ wrappers -------------------------------------


def prepare_dense_params(weight, bias, *, tm_max=512, tn_max=512, tk_max=512,
                         tile_budget_bytes=None):
    """Pad + pre-transpose nn.Linear parameters ONCE for the Pallas kernel.

    weight: (Dout, Din) PyTorch layout; stored as (Dinp, Doutp) so the kernel
            runs the canonical (tm,tk)x(tk,tn) MXU contraction.
    bias:   (Dout,) -> (1, Doutp).
    tn/tk are chosen here (batch-independent); tm is chosen per call.
    """
    Dout, Din = weight.shape
    assert bias.shape == (Dout,), bias.shape

    in_itemsize = 4  # parameters / activations streamed as float32
    vmem_soft_limit = _vmem_capacity_bytes() * 3 // 4   # 25% headroom
    budget = tile_budget_bytes if tile_budget_bytes is not None else vmem_soft_limit // 2

    Dinp = _round_up(Din, 128)      # lane-aligned K
    Doutp = _round_up(Dout, 128)    # lane-aligned N
    tn = _pick_tile(Doutp, tn_max, 128)

    # Prefer collapsing the K axis entirely (single MXU pass per output tile)
    # when the worst-case (tm = tm_max) double-buffered footprint fits.
    tk = Dinp
    if _footprint_bytes(tm_max, tn, tk, in_itemsize, with_acc=False) > budget:
        tk = _pick_tile(Dinp, tk_max, 128)
        while (_footprint_bytes(tm_max, tn, tk, in_itemsize, with_acc=True) > budget
               and (tk > 128 or tn > 128)):
            if tk > 128:
                tk = _pick_tile(Dinp, max(128, tk // 2), 128)
            else:
                tn = _pick_tile(Doutp, max(128, tn // 2), 128)

    Dinp = _round_up(Dinp, tk)
    Doutp = _round_up(Doutp, tn)

    w_t = jnp.pad(weight.T, ((0, Dinp - Din), (0, Doutp - Dout)))   # (Dinp, Doutp)
    b_p = jnp.pad(bias, (0, Doutp - Dout)).reshape(1, Doutp)

    return {
        "w": w_t, "b": b_p, "Din": Din, "Dout": Dout,
        "tn": tn, "tk": tk, "tm_max": tm_max,
        "vmem_soft_limit": vmem_soft_limit,
    }


def dense_layer_apply(x, params):
    """y = x @ weight.T + bias, then [..., None, None] (pure reshape glue)."""
    w, b = params["w"], params["b"]
    Din, Dout = params["Din"], params["Dout"]
    tn, tk, tm_max = params["tn"], params["tk"], params["tm_max"]
    Dinp, Doutp = w.shape

    *lead, din = x.shape
    assert din == Din, (din, Din)
    x2 = x.reshape(-1, Din)
    B = x2.shape[0]

    Bp = _round_up(B, 8)                      # sublane alignment
    tm = _pick_tile(Bp, tm_max, 8)
    Bp = _round_up(Bp, tm)
    grid_m = Bp // tm

    # v7x has 2 TensorCores: if the parallel (M,N) grid collapsed to one block
    # but Dout allows it, split N so the second core gets work.
    if grid_m == 1 and Doutp // tn == 1 and Doutp >= 256:
        tn = Doutp // 2 if (Doutp // 2) % 128 == 0 else 128
    grid_n = Doutp // tn
    grid_k = Dinp // tk

    # Pad activations only when needed (weight/bias padding was hoisted to
    # prepare_dense_params; K-pad is skipped when Din is already lane-aligned).
    if Bp != B or Dinp != Din:
        x_p = jnp.pad(x2, ((0, Bp - B), (0, Dinp - Din)))
    else:
        x_p = x2

    out_dtype = x.dtype
    use_acc_scratch = grid_k > 1 and out_dtype != jnp.float32
    footprint = _footprint_bytes(tm, tn, tk, 4, with_acc=use_acc_scratch)

    # Raise the scoped-VMEM limit only when the tiles actually need it, capped
    # at 75% of detected physical VMEM (headroom for compiler scratch on v7x).
    cp_kwargs = {}
    if footprint > 16 * 1024 * 1024:   # smallest default scoped limit (v5e)
        cp_kwargs["vmem_limit_bytes"] = int(
            min(max(2 * footprint, 32 * 1024 * 1024), params["vmem_soft_limit"]))

    if grid_k == 1:
        y = pl.pallas_call(
            _dense_kernel_single_k,
            out_shape=jax.ShapeDtypeStruct((Bp, Doutp), out_dtype),
            grid_spec=pltpu.PrefetchScalarGridSpec(
                num_scalar_prefetch=0,
                grid=(grid_m, grid_n),
                in_specs=[
                    pl.BlockSpec((tm, tk), lambda i, j: (i, 0)),   # x tile
                    pl.BlockSpec((tk, tn), lambda i, j: (0, j)),   # weight tile (K,N)
                    pl.BlockSpec((1, tn), lambda i, j: (0, j)),    # bias tile
                ],
                out_specs=pl.BlockSpec((tm, tn), lambda i, j: (i, j)),
            ),
            compiler_params=pltpu.CompilerParams(
                dimension_semantics=("parallel", "parallel"), **cp_kwargs),
        )(x_p, w, b)
    else:
        kernel = _dense_kernel_multi_k_acc if use_acc_scratch else _dense_kernel_multi_k_f32
        scratch = [pltpu.VMEM((tm, tn), jnp.float32)] if use_acc_scratch else []
        y = pl.pallas_call(
            kernel,
            out_shape=jax.ShapeDtypeStruct((Bp, Doutp), out_dtype),
            grid_spec=pltpu.PrefetchScalarGridSpec(
                num_scalar_prefetch=0,
                grid=(grid_m, grid_n, grid_k),          # K innermost (reduction)
                in_specs=[
                    pl.BlockSpec((tm, tk), lambda i, j, k: (i, k)),   # x tile
                    pl.BlockSpec((tk, tn), lambda i, j, k: (k, j)),   # weight tile
                    pl.BlockSpec((1, tn), lambda i, j, k: (0, j)),    # bias tile
                ],
                out_specs=pl.BlockSpec((tm, tn), lambda i, j, k: (i, j)),
                scratch_shapes=scratch,
            ),
            compiler_params=pltpu.CompilerParams(
                dimension_semantics=("parallel", "parallel", "arbitrary"),
                **cp_kwargs),
        )(x_p, w, b)

    y = y[:B, :Dout]
    return y.reshape(*lead, Dout, 1, 1)


def dense_layer(x, weight, bias, **prep_kwargs):
    """One-shot convenience wrapper. In production call prepare_dense_params
    once (it pads + transposes the weight) and reuse the result across calls."""
    return dense_layer_apply(x, prepare_dense_params(weight, bias, **prep_kwargs))


# ------------------------------- self-test -----------------------------------


if __name__ == "__main__":
    key = jax.random.PRNGKey(0)
    k_w, k_b, k_x, k_x3, k_w2, k_b2, k_x4 = jax.random.split(key, 7)

    # Small shapes matching the module's contract: x is (..., input_size).
    B, Din, Dout = 2, 32, 16
    bound = 1.0 / (Din ** 0.5)
    weight = jax.random.uniform(k_w, (Dout, Din), jnp.float32, -bound, bound)
    bias = jax.random.uniform(k_b, (Dout,), jnp.float32, -bound, bound)

    # Pad/transpose the parameters once (hoisted out of the per-call path).
    params = prepare_dense_params(weight, bias)

    # 2-D input (batch, features) — single-MXU-pass (K collapsed) path.
    x = jax.random.normal(k_x, (B, Din), jnp.float32)
    out = jax.block_until_ready(dense_layer_apply(x, params))
    ref = (x @ weight.T + bias).reshape(B, Dout, 1, 1)
    assert out.shape == (B, Dout, 1, 1), out.shape
    assert jnp.allclose(out, ref, atol=1e-5, rtol=1e-5), "mismatch (2-D input)"

    # Extra leading dims, like the PyTorch module's (..., Din) contract.
    x3 = jax.random.normal(k_x3, (B, 3, Din), jnp.float32)
    out3 = jax.block_until_ready(dense_layer_apply(x3, params))
    ref3 = (x3 @ weight.T + bias)[..., None, None]
    assert out3.shape == (B, 3, Dout, 1, 1), out3.shape
    assert jnp.allclose(out3, ref3, atol=1e-5, rtol=1e-5), "mismatch (3-D input)"

    # Exercise the multi-K-step accumulation path by forcing a tiny tile budget.
    B2, Din2, Dout2 = 16, 512, 256
    bound2 = 1.0 / (Din2 ** 0.5)
    w2 = jax.random.uniform(k_w2, (Dout2, Din2), jnp.float32, -bound2, bound2)
    b2 = jax.random.uniform(k_b2, (Dout2,), jnp.float32, -bound2, bound2)
    x4 = jax.random.normal(k_x4, (B2, Din2), jnp.float32)
    params2 = prepare_dense_params(w2, b2, tile_budget_bytes=256 * 1024)
    out4 = jax.block_until_ready(dense_layer_apply(x4, params2))
    ref4 = (x4 @ w2.T + b2).reshape(B2, Dout2, 1, 1)
    assert out4.shape == (B2, Dout2, 1, 1), out4.shape
    assert jnp.allclose(out4, ref4, atol=1e-3, rtol=1e-3), "mismatch (multi-K path)"

    print("KERNEL_OK")
</pallas_src>

<mosaic_0001>
module attributes {stable_mosaic.version = 11 : i64} {
  func.func @_dense_kernel_single_k(%arg0: i32, %arg1: i32, %arg2: memref<8x128xf32, #tpu.memory_space<vmem>>, %arg3: memref<128x128xf32, #tpu.memory_space<vmem>>, %arg4: memref<1x128xf32, #tpu.memory_space<vmem>>, %arg5: memref<8x128xf32, #tpu.memory_space<vmem>>) attributes {dimension_semantics = [#tpu.dimension_semantics<parallel>, #tpu.dimension_semantics<parallel>], iteration_bounds = array<i64: 1, 1>, scalar_prefetch = 0 : i64, scratch_operands = 0 : i64, tpu.core_type = #tpu.core_type<tc>, window_params = [{transform_indices = @transform_0, window_bounds = array<i64: 8, 128>}, {transform_indices = @transform_1, window_bounds = array<i64: 128, 128>}, {transform_indices = @transform_2, window_bounds = array<i64: 1, 128>}, {transform_indices = @transform_3, window_bounds = array<i64: 8, 128>}]} {
    %c0 = arith.constant 0 : index
    %c0_0 = arith.constant 0 : index
    %0 = vector.load %arg2[%c0, %c0_0] : memref<8x128xf32, #tpu.memory_space<vmem>>, vector<8x128xf32>
    %c0_1 = arith.constant 0 : index
    %c0_2 = arith.constant 0 : index
    %1 = vector.load %arg3[%c0_1, %c0_2] : memref<128x128xf32, #tpu.memory_space<vmem>>, vector<128x128xf32>
    %cst = arith.constant dense<0.000000e+00> : vector<8x128xf32>
    %2 = tpu.matmul %0, %1, %cst {dimension_numbers = #tpu.dot_dimension_numbers<[1], [0], [0], [1], [0, 0, 1, 1], [], []>} : vector<8x128xf32>, vector<128x128xf32>, vector<8x128xf32> -> vector<8x128xf32>
    %c0_3 = arith.constant 0 : index
    %c0_4 = arith.constant 0 : index
    %3 = vector.load %arg4[%c0_3, %c0_4] : memref<1x128xf32, #tpu.memory_space<vmem>>, vector<1x128xf32>
    %4 = vector.broadcast %3 : vector<1x128xf32> to vector<8x128xf32>
    %5 = arith.addf %2, %4 : vector<8x128xf32>
    %c0_5 = arith.constant 0 : index
    %c0_6 = arith.constant 0 : index
    %6 = vector.load %arg5[%c0_5, %c0_6] : memref<8x128xf32, #tpu.memory_space<vmem>>, vector<8x128xf32>
    tpu.vector_store %arg5[%c0_5, %c0_6], %5 {strides = array<i32>} : memref<8x128xf32, #tpu.memory_space<vmem>>, vector<8x128xf32>,
    return
  }
  func.func @transform_0(%arg0: i32, %arg1: i32) -> (i32, i32) {
    %c0_i32 = arith.constant 0 : i32
    %c0_i32_0 = arith.constant 0 : i32
    return %arg0, %c0_i32 : i32, i32
  }
  func.func @transform_1(%arg0: i32, %arg1: i32) -> (i32, i32) {
    %c0_i32 = arith.constant 0 : i32
    %c0_i32_0 = arith.constant 0 : i32
    return %c0_i32, %arg1 : i32, i32
  }
  func.func @transform_2(%arg0: i32, %arg1: i32) -> (i32, i32) {
    %c0_i32 = arith.constant 0 : i32
    %c0_i32_0 = arith.constant 0 : i32
    return %c0_i32, %arg1 : i32, i32
  }
  func.func @transform_3(%arg0: i32, %arg1: i32) -> (i32, i32) {
    %c0_i32 = arith.constant 0 : i32
    return %arg0, %arg1 : i32, i32
  }
}

</mosaic_0001>

<llo_original>
// kernel: tpu_custom_call.1
$region0: #{tpu_custom_call.1}
  #allocation0 [shape = 'u32[]', space=smem, size = 0x4, offset = 0x4, fixed_abs, tag = 'smem constant byte address 0x4 - core index']
  #allocation1 [shape = 'u32[144,128]{1,0:T(1,128)}', space=vmem, size = 0x12000, scoped, tag = 'internal scratch']
  %s0 = inlined_call_operand.hbm [shape: f32[8,128], index: 0, kind: input, shape index: {}]
  %s1 = inlined_call_operand.hbm [shape: f32[128,128], index: 1, kind: input, shape index: {}]
  %s2 = inlined_call_operand.vmem [shape: f32[1,128], index: 2, kind: input, shape index: {}]
  %s3 = inlined_call_operand.hbm [shape: f32[8,128], index: 3, kind: output, shape index: {}]
  %s4 = sld [smem:[#allocation0]]
  $region30: #{tpu_custom_call.1} parent=0
    _
  %s6 = ssub.s32 1, %s4
  %s7 = scalar_select 0, %s6, %s4
  $region1: #{tpu_custom_call.1} parent=0
    #allocation2 [shape = 'u8[4096]{0}', space=vmem, size = 0x1000, scoped, tag = 'input window, operand 0, single buffered']
    #allocation3 [shape = 's32[1]{0}', space=sflag, size = 0x4, scoped, tag = 'scoped memory for tpu_custom_call.1']
    #allocation4 [shape = 's32[1]{0}', space=sflag, size = 0x4, scoped, tag = 'scoped memory for tpu_custom_call.1']
    #allocation5 [shape = 'u8[65536]{0}', space=vmem, size = 0x10000, scoped, tag = 'input window, operand 1, single buffered']
    #allocation6 [shape = 's32[1]{0}', space=sflag, size = 0x4, scoped, tag = 'scoped memory for tpu_custom_call.1']
    #allocation7 [shape = 'u8[4096]{0}', space=vmem, size = 0x1000, scoped, tag = 'output window, operand 0, single buffered']
    %8 = vsyncpa [#allocation3], 0
    %9 = vsyncpa [#allocation6], 0
    %10 = vsyncpa [#allocation4], 0
    // Predicated region
    $region2: #{tpu_custom_call.1} parent=1 // pred_check
      _
    $region3: #{tpu_custom_call.1} parent=1 // pred_check_branch
      %12 = sbr.rel (0) target = $region5
    $region4: #{tpu_custom_call.1} parent=1 // pred_region
      %s14 = ssub.s32 128, 128
      %15 = vsyncadd [#allocation3], %s14
      %s17 = sshll.u32 [#allocation2], 4
      %s18 = int_to_ptr.vmem [resolvable:$true] %s17
      %20 = dma.hbm_to_vmem [thread:$0]  %s0, 128, %s18, [#allocation3]
    $region5: #{tpu_custom_call.1} parent=1 // pred_fallthru
      _
    // Predicated region
    $region6: #{tpu_custom_call.1} parent=1 // pred_check
      _
    $region7: #{tpu_custom_call.1} parent=1 // pred_check_branch
      %22 = sbr.rel (0) target = $region9
    $region8: #{tpu_custom_call.1} parent=1 // pred_region
      %s24 = ssub.s32 2048, 2048
      %25 = vsyncadd [#allocation6], %s24
      %s26 = sshll.u32 [#allocation5], 4
      %s27 = int_to_ptr.vmem [resolvable:$true] %s26
      %32 = dma.hbm_to_vmem [thread:$0]  %s1, 2048, %s27, [#allocation6], 128, 128, 8
    $region9: #{tpu_custom_call.1} parent=1 // pred_fallthru
      _
    // Predicated region
    $region10: #{tpu_custom_call.1} parent=1 // pred_check
      _
    $region11: #{tpu_custom_call.1} parent=1 // pred_check_branch
      %34 = sbr.rel (0) target = $region13
    $region12: #{tpu_custom_call.1} parent=1 // pred_region
      _
    $region13: #{tpu_custom_call.1} parent=1 // pred_fallthru
      _
    // Predicated region
    $region14: #{tpu_custom_call.1} parent=1 // pred_check
      _
    $region15: #{tpu_custom_call.1} parent=1 // pred_check_branch
      %36 = sbr.rel (0) target = $region17
    $region16: #{tpu_custom_call.1} parent=1 // pred_region
      %37 = dma.done [#allocation3], 128
    $region17: #{tpu_custom_call.1} parent=1 // pred_fallthru
      _
    // Predicated region
    $region18: #{tpu_custom_call.1} parent=1 // pred_check
      _
    $region19: #{tpu_custom_call.1} parent=1 // pred_check_branch
      %39 = sbr.rel (0) target = $region21
    $region20: #{tpu_custom_call.1} parent=1 // pred_region
      %40 = dma.done [#allocation6], 2048
    $region21: #{tpu_custom_call.1} parent=1 // pred_fallthru
      _
    %v41 = vld [vmem:[#allocation2] sm:$0xff]
    %v42 = vld [vmem:[#allocation5] sm:$0xff]
    %v43 = vld [vmem:[#allocation5 + $0x8] sm:$0xff]
    %v44 = vld [vmem:[#allocation5 + $0x10] sm:$0xff]
    %v45 = vld [vmem:[#allocation5 + $0x18] sm:$0xff]
    %v46 = vld [vmem:[#allocation5 + $0x20] sm:$0xff]
    %v47 = vld [vmem:[#allocation5 + $0x28] sm:$0xff]
    %v48 = vld [vmem:[#allocation5 + $0x30] sm:$0xff]
    %v49 = vld [vmem:[#allocation5 + $0x38] sm:$0xff]
    %v50 = vld [vmem:[#allocation5 + $0x40] sm:$0xff]
    %v51 = vld [vmem:[#allocation5 + $0x48] sm:$0xff]
    %v52 = vld [vmem:[#allocation5 + $0x50] sm:$0xff]
    %v53 = vld [vmem:[#allocation5 + $0x58] sm:$0xff]
    %v54 = vld [vmem:[#allocation5 + $0x60] sm:$0xff]
    %v55 = vld [vmem:[#allocation5 + $0x68] sm:$0xff]
    %v56 = vld [vmem:[#allocation5 + $0x70] sm:$0xff]
    %v57 = vld [vmem:[#allocation5 + $0x78] sm:$0xff]
    %v58 = vld [vmem:[%s2] sm:$0x1]
    %v60 = vlaneseq
    %v61 = vshrl.u32 %v60, 7
    %v62 = vsub.s32 0, %v61
    %v63 = vrot.slane %v58, %v62
    %65 = vmatprep.subr.mxu0 0.0
    %66 = vmatpush1.msra.mxu0 %v57
    %67 = vmatprep.subr.mxu0 0.0
    %68 = vmatpush1.msra.mxu0 %v56
    %69 = vmatprep.subr.mxu0 0.0
    %70 = vmatpush1.msra.mxu0 %v55
    %71 = vmatprep.subr.mxu0 0.0
    %72 = vmatpush1.msra.mxu0 %v54
    %73 = vmatprep.subr.mxu0 0.0
    %74 = vmatpush1.msra.mxu0 %v53
    %75 = vmatprep.subr.mxu0 0.0
    %76 = vmatpush1.msra.mxu0 %v52
    %77 = vmatprep.subr.mxu0 0.0
    %78 = vmatpush1.msra.mxu0 %v51
    %79 = vmatprep.subr.mxu0 0.0
    %80 = vmatpush1.msra.mxu0 %v50
    %81 = vmatprep.subr.mxu0 0.0
    %82 = vmatpush1.msra.mxu0 %v49
    %83 = vmatprep.subr.mxu0 0.0
    %84 = vmatpush1.msra.mxu0 %v48
    %85 = vmatprep.subr.mxu0 0.0
    %86 = vmatpush1.msra.mxu0 %v47
    %87 = vmatprep.subr.mxu0 0.0
    %88 = vmatpush1.msra.mxu0 %v46
    %89 = vmatprep.subr.mxu0 0.0
    %90 = vmatpush1.msra.mxu0 %v45
    %91 = vmatprep.subr.mxu0 0.0
    %92 = vmatpush1.msra.mxu0 %v44
    %93 = vmatprep.subr.mxu0 0.0
    %94 = vmatpush1.msra.mxu0 %v43
    %95 = vmatprep.subr.mxu0 0.0
    %96 = vmatpush1.msra.mxu0 %v42
    %97 = vmatprep.subr.mxu0 0.0
    %98 = vmatpush2.msra.mxu0 0.0
    %99 = vmatprep.subr.mxu0 0.0
    %100 = vmatpush2.msra.mxu0 0.0
    %101 = vmatprep.subr.mxu0 0.0
    %102 = vmatpush2.msra.mxu0 0.0
    %103 = vmatprep.subr.mxu0 0.0
    %104 = vmatpush2.msra.mxu0 0.0
    %105 = vmatprep.subr.mxu0 0.0
    %106 = vmatpush2.msra.mxu0 0.0
    %107 = vmatprep.subr.mxu0 0.0
    %108 = vmatpush2.msra.mxu0 0.0
    %109 = vmatprep.subr.mxu0 0.0
    %110 = vmatpush2.msra.mxu0 0.0
    %111 = vmatprep.subr.mxu0 0.0
    %112 = vmatpush2.msra.mxu0 0.0
    %113 = vmatprep.subr.mxu0 0.0
    %114 = vmatpush2.msra.mxu0 0.0
    %115 = vmatprep.subr.mxu0 0.0
    %116 = vmatpush2.msra.mxu0 0.0
    %117 = vmatprep.subr.mxu0 0.0
    %118 = vmatpush2.msra.mxu0 0.0
    %119 = vmatprep.subr.mxu0 0.0
    %120 = vmatpush2.msra.mxu0 0.0
    %121 = vmatprep.subr.mxu0 0.0
    %122 = vmatpush2.msra.mxu0 0.0
    %123 = vmatprep.subr.mxu0 0.0
    %124 = vmatpush2.msra.mxu0 0.0
    %125 = vmatprep.subr.mxu0 0.0
    %126 = vmatpush2.msra.mxu0 0.0
    %127 = vmatprep.subr.mxu0 0.0
    %128 = vmatpush2.msra.mxu0 0.0
    %129 = vmatprep.mubr.f32.mxu0 0.0
    %130 = vmatmul.mubr.f32.gmra.mxu0 %v41
    %v131 = vpop.f32.mrf.mxu0
    %v132 = vadd.f32 %v63, %v131
    %v133 = vpop.f32.mrf.mxu0
    %134 = vdwg.mxu0
    %135 = vst [vmem:[#allocation7] sm:$0xff] %v132
    // Predicated region
    $region22: #{tpu_custom_call.1} parent=1 // pred_check
      _
    $region23: #{tpu_custom_call.1} parent=1 // pred_check_branch
      %137 = sbr.rel (0) target = $region25
    $region24: #{tpu_custom_call.1} parent=1 // pred_region
      %s139 = ssub.s32 128, 128
      %140 = vsyncadd [#allocation4], %s139
      %s142 = sshll.u32 [#allocation7], 4
      %s143 = int_to_ptr.vmem [resolvable:$true] %s142
      %145 = dma.vmem_to_hbm [thread:$0]  %s143, 128, %s3, [#allocation4]
    $region25: #{tpu_custom_call.1} parent=1 // pred_fallthru
      _
    // Predicated region
    $region26: #{tpu_custom_call.1} parent=1 // pred_check
      _
    $region27: #{tpu_custom_call.1} parent=1 // pred_check_branch
      %147 = sbr.rel (0) target = $region29
    $region28: #{tpu_custom_call.1} parent=1 // pred_region
      %148 = dma.done [#allocation4], 128
    $region29: #{tpu_custom_call.1} parent=1 // pred_fallthru
      _
    %149 = vsyncpa [#allocation3], 1
    %150 = vsyncpa [#allocation6], 1
    %151 = vsyncpa [#allocation4], 1

</llo_original>
